<compile_context>
chip_gen: v5e
topology: v5e:2x2
jax: 0.10.0
libtpu: 0.0.40
codegen_flags: <defaults>
</compile_context>

<pallas_src>
import jax
import jax.numpy as jnp
from jax.experimental import pallas as pl
from jax.experimental.pallas import tpu as pltpu

_LANE = 128
_SUBLANE = 8
_NEG_INF = -1e30  # large finite negative: exp underflows to exactly 0, no inf-inf hazards


def _round_up(x, m):
    return ((x + m - 1) // m) * m


def _policy_net_kernel(x_ref, w1_ref, w2_ref, b_ref, out_ref):
    # x_ref : (TB, S)  bf16, streamed per grid step
    # w1_ref: (S, W)   bf16, VMEM-resident (constant index_map)
    # w2_ref: (W, W)   bf16, VMEM-resident
    # b_ref : (2, W)   f32; row 0 = b1 (zero-padded), row 1 = b2 (-1e30 in padded lanes)
    # out_ref: (TB, A) f32; only the real action columns are written back to HBM
    b = b_ref[...]
    b1 = b[0:1, :]
    b2 = b[1:2, :]

    # fc1 + ReLU (bf16 operands, f32 accumulation)
    h = jnp.dot(x_ref[...], w1_ref[...], preferred_element_type=jnp.float32) + b1
    h = jnp.maximum(h, 0.0)

    # fc2 (bf16 operands, f32 accumulation); padded action lanes get bias -1e30.
    logits = jnp.dot(h.astype(jnp.bfloat16), w2_ref[...],
                     preferred_element_type=jnp.float32) + b2

    # Numerically stable softmax over the padded action axis.  Padded lanes carry exactly
    # zero mass (exp(-1e30 - m) underflows to 0), so normalizing over the W padded lanes
    # is identical to normalizing over the A real lanes.
    m = jnp.max(logits, axis=-1, keepdims=True)       # XLU
    e = jnp.exp(logits - m)                            # EUP
    denom = jnp.sum(e, axis=-1, keepdims=True)         # XLU
    probs = e / denom                                   # exact divide: row sums == 1

    # Narrow store: only the real action columns go back to HBM.
    out_ref[...] = probs[:, : out_ref.shape[1]]


def pack_params(w1, b1, w2, b2):
    """Pack (S,H)/(H,)/(H,A)/(A,) params once into lane-dense, VMEM-resident operands."""
    S, H = w1.shape
    A = w2.shape[1]
    # Keep W at 128 (do NOT pad to 256 to "fill" the MXU; fill M with the batch tile).
    W = max(_round_up(H, _LANE), _round_up(A, _LANE))

    w1p = jnp.zeros((S, W), jnp.bfloat16).at[:, :H].set(w1.astype(jnp.bfloat16))
    w2p = jnp.zeros((W, W), jnp.bfloat16).at[:H, :A].set(w2.astype(jnp.bfloat16))
    bias = jnp.zeros((2, W), jnp.float32)
    bias = bias.at[0, :H].set(b1.reshape(-1).astype(jnp.float32))
    bias = bias.at[1, :].set(_NEG_INF)                 # padded action lanes -> zero prob
    bias = bias.at[1, :A].set(b2.reshape(-1).astype(jnp.float32))
    return w1p, w2p, bias


def _pick_batch_tile(B):
    if B <= 256:
        # Single tile equal to the (sublane-rounded) full batch.
        return _round_up(B, _SUBLANE)
    # >=2 tiles whenever possible (feeds both v7x TensorCores); multiples of 256 fill the
    # 256-wide MXU M dim (v6e/v7x) and are also multiples of 128 for v5e; cap at 2048 to
    # amortize per-step overhead while keeping double-buffered VMEM at a few MiB.
    half = _round_up((B + 1) // 2, 256)
    return min(2048, half)


def policy_net_forward(x, w1p, w2p, bias, action_num, *, batch_tile=None):
    """x: (B, S); packed params from pack_params(); returns (B, action_num) f32 probs."""
    B, S = x.shape
    W = w1p.shape[1]
    A = action_num

    TB = _pick_batch_tile(B) if batch_tile is None else batch_tile
    num_blocks = pl.cdiv(B, TB)
    B_pad = num_blocks * TB

    x = x.astype(jnp.bfloat16)   # halves input DMA; bf16 is the native MXU datapath
    if B_pad != B:
        # TODO(synk): for very large B, mask the ragged tail tile in-kernel instead of
        # padding to avoid an extra HBM pass over the activations.
        x = jnp.pad(x, ((0, B_pad - B), (0, 0)))

    out = pl.pallas_call(
        _policy_net_kernel,
        out_shape=jax.ShapeDtypeStruct((B_pad, A), jnp.float32),
        grid_spec=pltpu.PrefetchScalarGridSpec(
            num_scalar_prefetch=0,
            grid=(num_blocks,),
            in_specs=[
                pl.BlockSpec((TB, S), lambda i: (i, 0)),   # streamed activations
                pl.BlockSpec((S, W), lambda i: (0, 0)),    # resident fc1 weight
                pl.BlockSpec((W, W), lambda i: (0, 0)),    # resident fc2 weight
                pl.BlockSpec((2, W), lambda i: (0, 0)),    # resident packed biases
            ],
            out_specs=pl.BlockSpec((TB, A), lambda i: (i, 0)),  # narrow (TB, A) store
        ),
        compiler_params=pltpu.CompilerParams(
            # Independent batch tiles: lets v7x shard the grid across its 2 TensorCores.
            dimension_semantics=("parallel",),
        ),
    )(x, w1p, w2p, bias)

    return out if B_pad == B else out[:B]   # cheap contiguous row slice only


def init_params(key, state_dim, action_num, hidden_dim):
    # nn.Linear-style U(-1/sqrt(fan_in), 1/sqrt(fan_in)) init; weights stored (in, out).
    k1, k2, k3, k4 = jax.random.split(key, 4)
    bound1 = 1.0 / jnp.sqrt(jnp.float32(state_dim))
    bound2 = 1.0 / jnp.sqrt(jnp.float32(hidden_dim))
    w1 = jax.random.uniform(k1, (state_dim, hidden_dim), jnp.float32, -bound1, bound1)
    b1 = jax.random.uniform(k2, (hidden_dim,), jnp.float32, -bound1, bound1)
    w2 = jax.random.uniform(k3, (hidden_dim, action_num), jnp.float32, -bound2, bound2)
    b2 = jax.random.uniform(k4, (action_num,), jnp.float32, -bound2, bound2)
    return w1, b1, w2, b2


if __name__ == "__main__":
    state_dim, hidden_dim, action_num = 16, 32, 8

    key = jax.random.PRNGKey(0)
    kx_small, kx_big, kp = jax.random.split(key, 3)

    w1, b1, w2, b2 = init_params(kp, state_dim, action_num, hidden_dim)
    w1p, w2p, bias = pack_params(w1, b1, w2, b2)   # packing happens once, "at init time"

    def reference(x):
        h = jnp.maximum(x @ w1 + b1[None, :], 0.0)
        return jax.nn.softmax(h @ w2 + b2[None, :], axis=1)

    # Small batch (original module scale) plus a larger batch that exercises the
    # multi-tile grid and the pad / row-slice path.
    for batch, kx in ((8, kx_small), (300, kx_big)):
        x = jax.random.normal(kx, (batch, state_dim), jnp.float32)
        probs = jax.block_until_ready(policy_net_forward(x, w1p, w2p, bias, action_num))

        probs_ref = reference(x)
        assert probs.shape == (batch, action_num)
        # bf16 MXU operands vs. full-f32 reference -> 2e-2 tolerance on probabilities.
        err = float(jnp.max(jnp.abs(probs - probs_ref)))
        assert jnp.allclose(probs, probs_ref, atol=2e-2, rtol=2e-2), (
            f"mismatch at batch={batch}: max abs err={err}")
        # Exact divide in-kernel -> rows sum to 1 to f32 precision.
        assert jnp.allclose(jnp.sum(probs, axis=1), 1.0, atol=1e-3), (
            f"row sums off at batch={batch}")

    print("KERNEL_OK")
</pallas_src>

<mosaic_0001>
module attributes {stable_mosaic.version = 11 : i64} {
  func.func @_policy_net_kernel(%arg0: i32, %arg1: memref<8x16xbf16, #tpu.memory_space<vmem>>, %arg2: memref<16x128xbf16, #tpu.memory_space<vmem>>, %arg3: memref<128x128xbf16, #tpu.memory_space<vmem>>, %arg4: memref<2x128xf32, #tpu.memory_space<vmem>>, %arg5: memref<8x8xf32, #tpu.memory_space<vmem>>) attributes {dimension_semantics = [#tpu.dimension_semantics<parallel>], iteration_bounds = array<i64: 1>, scalar_prefetch = 0 : i64, scratch_operands = 0 : i64, tpu.core_type = #tpu.core_type<tc>, window_params = [{transform_indices = @transform_0, window_bounds = array<i64: 8, 16>}, {pipeline_mode = #tpu.pipeline_mode<synchronous>, transform_indices = @transform_1, window_bounds = array<i64: 16, 128>}, {pipeline_mode = #tpu.pipeline_mode<synchronous>, transform_indices = @transform_2, window_bounds = array<i64: 128, 128>}, {pipeline_mode = #tpu.pipeline_mode<synchronous>, transform_indices = @transform_3, window_bounds = array<i64: 2, 128>}, {transform_indices = @transform_4, window_bounds = array<i64: 8, 8>}]} {
    %c0 = arith.constant 0 : index
    %c0_0 = arith.constant 0 : index
    %0 = vector.load %arg4[%c0, %c0_0] : memref<2x128xf32, #tpu.memory_space<vmem>>, vector<2x128xf32>
    %1 = vector.extract_strided_slice %0 {offsets = [0, 0], sizes = [1, 128], strides = [1, 1]} : vector<2x128xf32> to vector<1x128xf32>
    %2 = vector.extract_strided_slice %0 {offsets = [1, 0], sizes = [1, 128], strides = [1, 1]} : vector<2x128xf32> to vector<1x128xf32>
    %c0_1 = arith.constant 0 : index
    %c0_2 = arith.constant 0 : index
    %3 = vector.load %arg1[%c0_1, %c0_2] : memref<8x16xbf16, #tpu.memory_space<vmem>>, vector<8x16xbf16>
    %c0_3 = arith.constant 0 : index
    %c0_4 = arith.constant 0 : index
    %4 = vector.load %arg2[%c0_3, %c0_4] : memref<16x128xbf16, #tpu.memory_space<vmem>>, vector<16x128xbf16>
    %cst = arith.constant dense<0.000000e+00> : vector<8x128xf32>
    %5 = tpu.matmul %3, %4, %cst {dimension_numbers = #tpu.dot_dimension_numbers<[1], [0], [0], [1], [0, 0, 1, 1], [], []>} : vector<8x16xbf16>, vector<16x128xbf16>, vector<8x128xf32> -> vector<8x128xf32>
    %6 = vector.broadcast %1 : vector<1x128xf32> to vector<8x128xf32>
    %7 = arith.addf %5, %6 : vector<8x128xf32>
    %cst_5 = arith.constant 0.000000e+00 : f32
    %8 = vector.broadcast %cst_5 : f32 to vector<8x128xf32>
    %9 = arith.maximumf %7, %8 : vector<8x128xf32>
    %10 = arith.truncf %9 : vector<8x128xf32> to vector<8x128xbf16>
    %c0_6 = arith.constant 0 : index
    %c0_7 = arith.constant 0 : index
    %11 = vector.load %arg3[%c0_6, %c0_7] : memref<128x128xbf16, #tpu.memory_space<vmem>>, vector<128x128xbf16>
    %cst_8 = arith.constant dense<0.000000e+00> : vector<8x128xf32>
    %12 = tpu.matmul %10, %11, %cst_8 {dimension_numbers = #tpu.dot_dimension_numbers<[1], [0], [0], [1], [0, 0, 1, 1], [], []>} : vector<8x128xbf16>, vector<128x128xbf16>, vector<8x128xf32> -> vector<8x128xf32>
    %13 = vector.broadcast %2 : vector<1x128xf32> to vector<8x128xf32>
    %14 = arith.addf %12, %13 : vector<8x128xf32>
    %cst_9 = arith.constant dense<0xFF800000> : vector<8xf32>
    %15 = vector.multi_reduction <maximumf>, %14, %cst_9 [1] : vector<8x128xf32> to vector<8xf32>
    %16 = vector.shape_cast %15 : vector<8xf32> to vector<8x1xf32>
    %17 = vector.broadcast %16 : vector<8x1xf32> to vector<8x128xf32>
    %18 = arith.subf %14, %17 : vector<8x128xf32>
    %19 = math.exp %18 : vector<8x128xf32>
    %cst_10 = arith.constant dense<0.000000e+00> : vector<8xf32>
    %20 = vector.multi_reduction <add>, %19, %cst_10 [1] : vector<8x128xf32> to vector<8xf32>
    %21 = vector.shape_cast %20 : vector<8xf32> to vector<8x1xf32>
    %22 = vector.broadcast %21 : vector<8x1xf32> to vector<8x128xf32>
    %23 = arith.divf %19, %22 : vector<8x128xf32>
    %24 = vector.extract_strided_slice %23 {offsets = [0, 0], sizes = [8, 8], strides = [1, 1]} : vector<8x128xf32> to vector<8x8xf32>
    %c0_11 = arith.constant 0 : index
    %c0_12 = arith.constant 0 : index
    %25 = vector.load %arg5[%c0_11, %c0_12] : memref<8x8xf32, #tpu.memory_space<vmem>>, vector<8x8xf32>
    tpu.vector_store %arg5[%c0_11, %c0_12], %24 {strides = array<i32>} : memref<8x8xf32, #tpu.memory_space<vmem>>, vector<8x8xf32>,
    return
  }
  func.func @transform_0(%arg0: i32) -> (i32, i32) {
    %c0_i32 = arith.constant 0 : i32
    %c0_i32_0 = arith.constant 0 : i32
    return %arg0, %c0_i32 : i32, i32
  }
  func.func @transform_1(%arg0: i32) -> (i32, i32) {
    %c0_i32 = arith.constant 0 : i32
    %c0_i32_0 = arith.constant 0 : i32
    %c0_i32_1 = arith.constant 0 : i32
    return %c0_i32, %c0_i32_0 : i32, i32
  }
  func.func @transform_2(%arg0: i32) -> (i32, i32) {
    %c0_i32 = arith.constant 0 : i32
    %c0_i32_0 = arith.constant 0 : i32
    %c0_i32_1 = arith.constant 0 : i32
    return %c0_i32, %c0_i32_0 : i32, i32
  }
  func.func @transform_3(%arg0: i32) -> (i32, i32) {
    %c0_i32 = arith.constant 0 : i32
    %c0_i32_0 = arith.constant 0 : i32
    %c0_i32_1 = arith.constant 0 : i32
    return %c0_i32, %c0_i32_0 : i32, i32
  }
  func.func @transform_4(%arg0: i32) -> (i32, i32) {
    %c0_i32 = arith.constant 0 : i32
    %c0_i32_0 = arith.constant 0 : i32
    return %arg0, %c0_i32 : i32, i32
  }
}

</mosaic_0001>

<llo_original>
// kernel: tpu_custom_call.1
$region0: #{tpu_custom_call.1}
  #allocation0 [shape = 'u32[]', space=smem, size = 0x4, offset = 0x4, fixed_abs, tag = 'smem constant byte address 0x4 - core index']
  #allocation1 [shape = 'u32[72,128]{1,0:T(1,128)}', space=vmem, size = 0x9000, scoped, tag = 'internal scratch']
  %s0 = inlined_call_operand.hbm [shape: bf16[8,16], index: 0, kind: input, shape index: {}]
  %s1 = inlined_call_operand.hbm [shape: bf16[16,128], index: 1, kind: input, shape index: {}]
  %s2 = inlined_call_operand.hbm [shape: bf16[128,128], index: 2, kind: input, shape index: {}]
  %s3 = inlined_call_operand.vmem [shape: f32[2,128], index: 3, kind: input, shape index: {}]
  %s4 = inlined_call_operand.hbm [shape: f32[8,8], index: 4, kind: output, shape index: {}]
  %s5 = sld [smem:[#allocation0]]
  $region38: #{tpu_custom_call.1} parent=0
    _
  %s7 = ssub.s32 1, %s5
  %s8 = scalar_select 0, %s7, %s5
  $region1: #{tpu_custom_call.1} parent=0
    #allocation2 [shape = 'u8[2048]{0}', space=vmem, size = 0x800, scoped, tag = 'input window, operand 0, single buffered']
    #allocation3 [shape = 's32[1]{0}', space=sflag, size = 0x4, scoped, tag = 'scoped memory for tpu_custom_call.1']
    #allocation4 [shape = 's32[1]{0}', space=sflag, size = 0x4, scoped, tag = 'scoped memory for tpu_custom_call.1']
    #allocation5 [shape = 'u8[4096]{0}', space=vmem, size = 0x1000, scoped, tag = 'input window, operand 1, single buffered']
    #allocation6 [shape = 's32[1]{0}', space=sflag, size = 0x4, scoped, tag = 'scoped memory for tpu_custom_call.1']
    #allocation7 [shape = 'u8[32768]{0}', space=vmem, size = 0x8000, scoped, tag = 'input window, operand 2, single buffered']
    #allocation8 [shape = 'u8[4096]{0}', space=vmem, size = 0x1000, scoped, tag = 'output window, operand 0, single buffered']
    %9 = vsyncpa [#allocation3], 0
    %10 = vsyncpa [#allocation6], 0
    %11 = vsyncpa [#allocation4], 0
    // Predicated region
    $region2: #{tpu_custom_call.1} parent=1 // pred_check
      _
    $region3: #{tpu_custom_call.1} parent=1 // pred_check_branch
      %13 = sbr.rel (0) target = $region5
    $region4: #{tpu_custom_call.1} parent=1 // pred_region
      %15 = vsyncadd [#allocation3], 0
      %s17 = sshll.u32 %s0, 4
      %s18 = int_to_ptr.hbm [resolvable:$true] %s17
      %s19 = sshll.u32 [#allocation2], 4
      %s20 = int_to_ptr.vmem [resolvable:$true] %s19
      %22 = dma.hbm_to_vmem [thread:$0]  %s18, 64, %s20, [#allocation3]
    $region5: #{tpu_custom_call.1} parent=1 // pred_fallthru
      _
    // Predicated region
    $region6: #{tpu_custom_call.1} parent=1 // pred_check
      _
    $region7: #{tpu_custom_call.1} parent=1 // pred_check_branch
      %24 = sbr.rel (0) target = $region9
    $region8: #{tpu_custom_call.1} parent=1 // pred_region
      %26 = vsyncadd [#allocation6], 0
      %s27 = sshll.u32 %s1, 4
      %s28 = int_to_ptr.hbm [resolvable:$true] %s27
      %s29 = sshll.u32 [#allocation5], 4
      %s30 = int_to_ptr.vmem [resolvable:$true] %s29
      %35 = dma.hbm_to_vmem [thread:$0]  %s28, 128, %s30, [#allocation6], 64, 64, 4
    $region9: #{tpu_custom_call.1} parent=1 // pred_fallthru
      _
    // Predicated region
    $region10: #{tpu_custom_call.1} parent=1 // pred_check
      _
    $region11: #{tpu_custom_call.1} parent=1 // pred_check_branch
      %37 = sbr.rel (0) target = $region13
    $region12: #{tpu_custom_call.1} parent=1 // pred_region
      %39 = vsyncadd [#allocation6], 0
      %s40 = sshll.u32 %s2, 4
      %s41 = int_to_ptr.hbm [resolvable:$true] %s40
      %s42 = sshll.u32 [#allocation7], 4
      %s43 = int_to_ptr.vmem [resolvable:$true] %s42
      %48 = dma.hbm_to_vmem [thread:$0]  %s41, 1024, %s43, [#allocation6], 64, 64, 4
    $region13: #{tpu_custom_call.1} parent=1 // pred_fallthru
      _
    // Predicated region
    $region14: #{tpu_custom_call.1} parent=1 // pred_check
      _
    $region15: #{tpu_custom_call.1} parent=1 // pred_check_branch
      %50 = sbr.rel (0) target = $region17
    $region16: #{tpu_custom_call.1} parent=1 // pred_region
      _
    $region17: #{tpu_custom_call.1} parent=1 // pred_fallthru
      _
    // Predicated region
    $region18: #{tpu_custom_call.1} parent=1 // pred_check
      _
    $region19: #{tpu_custom_call.1} parent=1 // pred_check_branch
      %52 = sbr.rel (0) target = $region21
    $region20: #{tpu_custom_call.1} parent=1 // pred_region
      %54 = dma.done [#allocation3], 64
    $region21: #{tpu_custom_call.1} parent=1 // pred_fallthru
      _
    // Predicated region
    $region22: #{tpu_custom_call.1} parent=1 // pred_check
      _
    $region23: #{tpu_custom_call.1} parent=1 // pred_check_branch
      %56 = sbr.rel (0) target = $region25
    $region24: #{tpu_custom_call.1} parent=1 // pred_region
      %58 = dma.done [#allocation6], 128
    $region25: #{tpu_custom_call.1} parent=1 // pred_fallthru
      _
    // Predicated region
    $region26: #{tpu_custom_call.1} parent=1 // pred_check
      _
    $region27: #{tpu_custom_call.1} parent=1 // pred_check_branch
      %60 = sbr.rel (0) target = $region29
    $region28: #{tpu_custom_call.1} parent=1 // pred_region
      %62 = dma.done [#allocation6], 1024
    $region29: #{tpu_custom_call.1} parent=1 // pred_fallthru
      _
    %v64 = vld [vmem:[%s3] sm:$0x3]
    %v65 = vld [vmem:[#allocation2] sm:$0xf]
    %v66 = vld [vmem:[#allocation5] sm:$0xf]
    %v67 = vld [vmem:[#allocation5 + $0x4] sm:$0xf]
    %v68 = vperm.slane %v64, 0
    %v71 = vunpack.c.l.b16 %v66
    %v72 = vunpack.c.l.b16 %v67
    %v73 = vpack.c.b16 %v72, %v71
    %vm75 = vcmask 130048
    %v77 = vsel %vm75, %v65, 0
    %79 = vmatpush.bf16.msra.mxu0 0
    %80 = vmatpush.bf16.msra.mxu0 0
    %81 = vmatpush.bf16.msra.mxu0 0
    %82 = vmatpush.bf16.msra.mxu0 0
    %83 = vmatpush.bf16.msra.mxu0 0
    %84 = vmatpush.bf16.msra.mxu0 0
    %85 = vmatpush.bf16.msra.mxu0 0
    %86 = vmatpush.bf16.msra.mxu0 %v73
    %87 = vmatmul.bf16.gmra.mxu0 %v77
    %v88 = vpop.f32.mrf.mxu0
    %v89 = vadd.f32 %v68, %v88
    %v90 = vpop.f32.mrf.mxu0
    %91 = vdwg.mxu0
    %v92 = vmax.f32 %v89, 0.0
    %v93 = vpack.c.bf16 %v92, %v92
    %v94 = vld [vmem:[#allocation7] sm:$0xf]
    %v95 = vld [vmem:[#allocation7 + $0x4] sm:$0xf]
    %v96 = vld [vmem:[#allocation7 + $0x8] sm:$0xf]
    %v97 = vld [vmem:[#allocation7 + $0xc] sm:$0xf]
    %v98 = vld [vmem:[#allocation7 + $0x10] sm:$0xf]
    %v99 = vld [vmem:[#allocation7 + $0x14] sm:$0xf]
    %v100 = vld [vmem:[#allocation7 + $0x18] sm:$0xf]
    %v101 = vld [vmem:[#allocation7 + $0x1c] sm:$0xf]
    %v102 = vld [vmem:[#allocation7 + $0x20] sm:$0xf]
    %v103 = vld [vmem:[#allocation7 + $0x24] sm:$0xf]
    %v104 = vld [vmem:[#allocation7 + $0x28] sm:$0xf]
    %v105 = vld [vmem:[#allocation7 + $0x2c] sm:$0xf]
    %v106 = vld [vmem:[#allocation7 + $0x30] sm:$0xf]
    %v107 = vld [vmem:[#allocation7 + $0x34] sm:$0xf]
    %v108 = vld [vmem:[#allocation7 + $0x38] sm:$0xf]
    %v109 = vld [vmem:[#allocation7 + $0x3c] sm:$0xf]
    %v110 = vperm.slane %v64, 1
    %v127 = vunpack.c.l.b16 %v94
    %v128 = vunpack.c.l.b16 %v95
    %v129 = vunpack.c.l.b16 %v96
    %v130 = vunpack.c.l.b16 %v97
    %v131 = vunpack.c.l.b16 %v98
    %v132 = vunpack.c.l.b16 %v99
    %v133 = vunpack.c.l.b16 %v100
    %v134 = vunpack.c.l.b16 %v101
    %v135 = vunpack.c.l.b16 %v102
    %v136 = vunpack.c.l.b16 %v103
    %v137 = vunpack.c.l.b16 %v104
    %v138 = vunpack.c.l.b16 %v105
    %v139 = vunpack.c.l.b16 %v106
    %v140 = vunpack.c.l.b16 %v107
    %v141 = vunpack.c.l.b16 %v108
    %v142 = vunpack.c.l.b16 %v109
    %v143 = vpack.c.b16 %v128, %v127
    %v144 = vpack.c.b16 %v130, %v129
    %v145 = vpack.c.b16 %v132, %v131
    %v146 = vpack.c.b16 %v134, %v133
    %v147 = vpack.c.b16 %v136, %v135
    %v148 = vpack.c.b16 %v138, %v137
    %v149 = vpack.c.b16 %v140, %v139
    %v150 = vpack.c.b16 %v142, %v141
    %159 = vmatpush.bf16.msra.mxu0 %v150
    %160 = vmatpush.bf16.msra.mxu0 %v149
    %161 = vmatpush.bf16.msra.mxu0 %v148
    %162 = vmatpush.bf16.msra.mxu0 %v147
    %163 = vmatpush.bf16.msra.mxu0 %v146
    %164 = vmatpush.bf16.msra.mxu0 %v145
    %165 = vmatpush.bf16.msra.mxu0 %v144
    %166 = vmatpush.bf16.msra.mxu0 %v143
    %167 = vmatmul.bf16.gmra.mxu0 %v93
    %v168 = vpop.f32.mrf.mxu0
    %v169 = vadd.f32 %v110, %v168
    %v170 = vpop.f32.mrf.mxu0
    %171 = vdwg.mxu0
    %172 = vmax.xlane.f32.xlu0 %v169
    %v173 = vpop.xlane.xlu0 %172
    %v174 = vsub.f32 %v169, %v173
    %v175 = vmul.f32 %v174, 1.442695
    %v176 = vpow.pop %v175
    %177 = vadd.xlane.f32.xlu0 %v176
    %v178 = vpop.xlane.xlu0 %177
    %v179 = vrcp.pop %v178
    %v180 = vmul.f32 %v178, %v179
    %v181 = vsub.f32 1.0, %v180
    %v182 = vmul.f32 %v179, %v181
    %v183 = vadd.f32 %v179, %v182
    %vm184 = vweird.f32 %v178
    %vm185 = vweird.f32 %v179
    %vm186 = vmor %vm184, %vm185
    %v187 = vsel %vm186, %v179, %v183
    %v188 = vand.u32 2147483647, %v178
    %vm189 = vcmp.eq.f32.partialorder %v188, 8.507059e+37
    %v190 = vand.u32 %v178, 2147483648
    %v191 = vor.u32 1.1754944e-38, %v190
    %v192 = vsel %vm189, %v191, %v187
    %v193 = vmul.f32 %v176, %v192
    %vm194 = vcmask 64512
    %195 = vst.msk [vmem:[#allocation8] sm:$0xff] %vm194, %v193
    // Predicated region
    $region30: #{tpu_custom_call.1} parent=1 // pred_check
      _
    $region31: #{tpu_custom_call.1} parent=1 // pred_check_branch
      %197 = sbr.rel (0) target = $region33
    $region32: #{tpu_custom_call.1} parent=1 // pred_region
      %199 = vsyncadd [#allocation4], 0
      %s201 = sshll.u32 [#allocation8], 4
      %s202 = int_to_ptr.vmem [resolvable:$true] %s201
      %s203 = sshll.u32 %s4, 4
      %s204 = int_to_ptr.hbm [resolvable:$true] %s203
      %206 = dma.vmem_to_hbm [thread:$0]  %s202, 128, %s204, [#allocation4]
    $region33: #{tpu_custom_call.1} parent=1 // pred_fallthru
      _
    // Predicated region
    $region34: #{tpu_custom_call.1} parent=1 // pred_check
      _
    $region35: #{tpu_custom_call.1} parent=1 // pred_check_branch
      %208 = sbr.rel (0) target = $region37
    $region36: #{tpu_custom_call.1} parent=1 // pred_region
      %210 = dma.done [#allocation4], 128
    $region37: #{tpu_custom_call.1} parent=1 // pred_fallthru
      _
    %211 = vsyncpa [#allocation3], 1
    %212 = vsyncpa [#allocation6], 1
    %213 = vsyncpa [#allocation4], 1

</llo_original>
